<compile_context>
chip_gen: v5e
topology: v5e:2x2
jax: 0.10.0
libtpu: 0.0.40
codegen_flags: <defaults>
</compile_context>

<pallas_src>
import numpy as np
import jax
import jax.numpy as jnp
from jax.experimental import pallas as pl
from jax.experimental.pallas import tpu as pltpu


# ----------------------------------------------------------------------------
# Pallas kernel: the entire (collapsed) decoder on one tile of packed rows.
# ----------------------------------------------------------------------------
def _decoder_matmul_kernel(x_ref, w_ref, b_ref, o_ref):
    o_ref[...] = (
        jnp.dot(x_ref[...], w_ref[...], preferred_element_type=jnp.float32)
        + b_ref[...]
    ).astype(o_ref.dtype)


# ----------------------------------------------------------------------------
# Decoder construction — faithful replication of KpconvDecoder.__init__
# ----------------------------------------------------------------------------
class Config:
    first_subsampling_dl = 0.04
    conv_radius = 2.5
    first_features_dim = 8
    num_kernel_points = 15
    kpconv_architecture = [
        "simple",
        "resnetb_strided",
        "simple",
        "resnetb_strided",
        "nearest_upsample",
        "unary_simple",
        "nearest_upsample",
        "unary_simple",
    ]


def build_kpconv_decoder(config, key):
    arch = config.kpconv_architecture
    layer = 0
    r = config.first_subsampling_dl * config.conv_radius
    in_dim = config.first_features_dim * 2 ** (len(arch) - 2)
    out_dim = config.first_features_dim
    decoder_concats = []
    decoder_skip_dims = []
    start_i = 0
    for block_i, block in enumerate(arch):
        if "upsample" in block:
            start_i = block_i
            break
        if any(tmp in block for tmp in ["pool", "strided", "upsample", "global"]):
            decoder_skip_dims.append(in_dim)
        in_dim = out_dim
        if "pool" in block or "strided" in block:
            layer += 1
            r *= 2
            out_dim *= 2

    entry_in_dim = in_dim
    blocks = []
    for block_i, block in enumerate(arch[start_i:]):
        if block_i > 0 and "upsample" in arch[start_i + block_i - 1]:
            in_dim += decoder_skip_dims[layer]
            decoder_concats.append(block_i)
        key, kw, kb = jax.random.split(key, 3)
        if "simple" in block:
            bound = 1.0 / np.sqrt(in_dim * 1)
            w = jax.random.uniform(kw, (out_dim, in_dim, 1), jnp.float32, -bound, bound)
            b = jax.random.uniform(kb, (out_dim,), jnp.float32, -bound, bound)
            blocks.append(("simple", w, b))
        elif "pool" in block or "strided" in block:
            bound = 1.0 / np.sqrt(in_dim * 2)
            w = jax.random.uniform(kw, (out_dim, in_dim, 2), jnp.float32, -bound, bound)
            b = jax.random.uniform(kb, (out_dim,), jnp.float32, -bound, bound)
            blocks.append(("strided", w, b))
        elif "upsample" in block:
            bound = 1.0 / np.sqrt(in_dim * 2)
            w = jax.random.uniform(kw, (in_dim, out_dim, 2), jnp.float32, -bound, bound)
            b = jax.random.uniform(kb, (out_dim,), jnp.float32, -bound, bound)
            blocks.append(("upsample", w, b))
        else:
            raise ValueError(f"Unknown block type: {block}")
        in_dim = out_dim
        if "upsample" in block:
            layer -= 1
            r *= 0.5
    return blocks, decoder_concats, decoder_skip_dims, entry_in_dim


# ----------------------------------------------------------------------------
# One-time weight composition for the fused kernel (all done in f32).
# ----------------------------------------------------------------------------
def _block_diag(w, n):
    a, b = w.shape
    out = jnp.zeros((n * a, n * b), w.dtype)
    for k in range(n):
        out = out.at[k * a:(k + 1) * a, k * b:(k + 1) * b].set(w)
    return out


def prepare_fused_params(blocks, decoder_concats, compute_dtype=jnp.float32):
    """Compose the 4 linear decoder blocks into ONE affine map on the packed
    rows-by-channels layout:  out = [x | skip1 | skip0] @ W_total + b_total."""
    types = [t for t, _, _ in blocks]
    assert types == ["upsample", "simple", "upsample", "simple"], types
    assert list(decoder_concats) == [1, 3], decoder_concats
    (_, w1, b1), (_, w2, b2), (_, w3, b3), (_, w4, b4) = blocks

    cin1, cout1, _ = w1.shape          # ConvTranspose1d weight: (Cin, Cout, 2)
    cout3 = w3.shape[1]
    cout4 = w4.shape[0]

    # Per-block matrices in the packed-row layout (exactly as a staged kernel
    # would use them), built once in f32.
    w1_cat = jnp.concatenate([w1[:, :, 0], w1[:, :, 1]], axis=1)   # (Cin1, 2*Cout1)
    b1_cat = jnp.tile(b1, 2)[None, :]

    w2t = jnp.transpose(w2[:, :, 0])                               # (Cin2, Cout2)
    w2a = _block_diag(w2t[:cout1, :], 2)                           # (2*Cout1, 2*Cout2)
    w2b = _block_diag(w2t[cout1:, :], 2)                           # (2*Cs1,  2*Cout2)
    b2_cat = jnp.tile(b2, 2)[None, :]

    w3_cat = jnp.concatenate([w3[:, :, 0], w3[:, :, 1]], axis=1)   # (Cin3, 2*Cout3)
    w3_bd = _block_diag(w3_cat, 2)                                 # (2*Cin3, 4*Cout3)
    b3_cat = jnp.tile(b3, 4)[None, :]

    w4t = jnp.transpose(w4[:, :, 0])                               # (Cin4, Cout4)
    w4a = _block_diag(w4t[:cout3, :], 4)                           # (4*Cout3, 4*Cout4)
    w4b = _block_diag(w4t[cout3:, :], 4)                           # (4*Cs0,  4*Cout4)
    b4_cat = jnp.tile(b4, 4)[None, :]

    # No nonlinearity anywhere -> compose the affine chain.
    tail_34 = jnp.dot(w3_bd, w4a)                                  # (2*Cout2, 4*Cout4)
    w_x = jnp.dot(jnp.dot(w1_cat, w2a), tail_34)                   # (Cin1,   4*Cout4)
    w_s1 = jnp.dot(w2b, tail_34)                                   # (2*Cs1,  4*Cout4)
    w_s0 = w4b                                                     # (4*Cs0,  4*Cout4)
    w_total = jnp.concatenate([w_x, w_s1, w_s0], axis=0)           # (80, 128)
    b_total = (jnp.dot(jnp.dot(b1_cat, w2a), tail_34)
               + jnp.dot(b2_cat, tail_34)
               + jnp.dot(b3_cat, w4a)
               + b4_cat)                                           # (1, 128)

    return dict(
        w=w_total.astype(compute_dtype),
        b=b_total.astype(jnp.float32),
        cin=int(cin1),
        cout=int(cout4),
    )


# ----------------------------------------------------------------------------
# Fused forward (matches KpconvDecoder.forward for this architecture)
# ----------------------------------------------------------------------------
def kpconv_decoder_forward(fused, x_ncl, skip_x, *, tile_rows=4096):
    """x_ncl: (B, Cin, L); skip_x popped from the end exactly like the PyTorch
    forward (block 1 uses skip_x[-1] @ 2L, block 3 uses skip_x[-2] @ 4L)."""
    B, c_in, L = x_ncl.shape
    s_mid = skip_x[-1]        # first pop  (concat before block 1)
    s_fine = skip_x[-2]       # second pop (concat before block 3)
    cdt = fused["w"].dtype
    cout = fused["cout"]
    out_w = fused["w"].shape[1]                 # 4 * Cout  (=128: lane-dense)

    N = B * L
    # NCL -> rows-by-channels; pack the 2 mid / 4 fine spatial positions each
    # coarse row generates along the lane axis, and fuse the three feature maps
    # into ONE lane-packed input (single XLA transpose+concat fusion, single
    # DMA stream into the kernel).
    x_rows = jnp.transpose(x_ncl, (0, 2, 1)).reshape(N, c_in)
    s1_rows = jnp.transpose(s_mid, (0, 2, 1)).reshape(N, 2 * s_mid.shape[1])
    s0_rows = jnp.transpose(s_fine, (0, 2, 1)).reshape(N, 4 * s_fine.shape[1])
    rows = jnp.concatenate([x_rows, s1_rows, s0_rows], axis=1).astype(cdt)
    k_in = rows.shape[1]
    assert k_in == fused["w"].shape[0]

    # Row tiling: pad rows so every grid step is a full, aligned block.
    tn = min(tile_rows, N)
    n_pad = pl.cdiv(N, tn) * tn
    if n_pad != N:
        rows = jnp.pad(rows, ((0, n_pad - N), (0, 0)))
    grid = (n_pad // tn,)

    out_rows = pl.pallas_call(
        _decoder_matmul_kernel,
        out_shape=jax.ShapeDtypeStruct((n_pad, out_w), jnp.float32),
        grid=grid,
        in_specs=[pl.BlockSpec((tn, k_in), lambda i: (i, 0)),
                  pl.BlockSpec(fused["w"].shape, lambda i: (0, 0)),
                  pl.BlockSpec(fused["b"].shape, lambda i: (0, 0))],
        out_specs=pl.BlockSpec((tn, out_w), lambda i: (i, 0)),
        compiler_params=pltpu.CompilerParams(
            dimension_semantics=("parallel",)),   # shards row tiles on v7x's 2 TCs
    )(rows, fused["w"], fused["b"])

    out_rows = out_rows[:N]
    # (B*L, 4*Cout) -> (B, 4L, Cout) -> (B, Cout, 4L)   (single exit transpose)
    return jnp.transpose(out_rows.reshape(B, 4 * L, cout), (0, 2, 1))


# ----------------------------------------------------------------------------
# Pure-JAX staged reference (correctness check only)
# ----------------------------------------------------------------------------
def _ref_forward(blocks, decoder_concats, x, skip_x):
    skip_x = list(skip_x)
    for block_i, (btype, w, b) in enumerate(blocks):
        if block_i in decoder_concats:
            x = jnp.concatenate([x, skip_x.pop()], axis=1)
        if btype == "simple":
            x = jnp.einsum("oi,bil->bol", w[:, :, 0], x) + b[None, :, None]
        elif btype == "strided":
            B, C, L = x.shape
            xp = x.reshape(B, C, L // 2, 2)
            x = (jnp.einsum("oi,bil->bol", w[:, :, 0], xp[..., 0])
                 + jnp.einsum("oi,bil->bol", w[:, :, 1], xp[..., 1])
                 + b[None, :, None])
        else:  # upsample (ConvTranspose1d k=2 s=2)
            y_e = jnp.einsum("io,bil->bol", w[:, :, 0], x) + b[None, :, None]
            y_o = jnp.einsum("io,bil->bol", w[:, :, 1], x) + b[None, :, None]
            B, Co, L = y_e.shape
            x = jnp.stack([y_e, y_o], axis=-1).reshape(B, Co, 2 * L)
    return x


if __name__ == "__main__":
    config = Config()
    root = jax.random.PRNGKey(0)
    kparam, kx, ks0, ks1 = jax.random.split(root, 4)

    blocks, decoder_concats, skip_dims, entry_in_dim = build_kpconv_decoder(config, kparam)
    # blocks = [ConvT(16->32), Conv1(48->32), ConvT(32->32), Conv1(40->32)]
    # decoder_concats = [1, 3], decoder_skip_dims = [8, 16], entry_in_dim = 16.

    B, L = 2, 8
    x = jax.random.normal(kx, (B, entry_in_dim, L), dtype=jnp.float32)        # (2, 16, 8)
    skip_x = [
        jax.random.normal(ks0, (B, skip_dims[0], 4 * L), dtype=jnp.float32),  # (2, 8, 32)
        jax.random.normal(ks1, (B, skip_dims[1], 2 * L), dtype=jnp.float32),  # (2, 16, 16)
    ]

    ref = _ref_forward(blocks, decoder_concats, x, skip_x)

    # --- f32 path: exact (up to fp reassociation) semantics of the module ---
    fused_f32 = prepare_fused_params(blocks, decoder_concats, jnp.float32)
    fwd_f32 = jax.jit(lambda a, s: kpconv_decoder_forward(fused_f32, a, s))
    out = jax.block_until_ready(fwd_f32(x, skip_x))
    assert out.shape == ref.shape == (B, config.first_features_dim * 4, 4 * L)
    np.testing.assert_allclose(np.asarray(out), np.asarray(ref), rtol=1e-4, atol=1e-5)

    # --- bf16-MXU path (v6e/v7x optimization): bf16 in, f32 accumulate ------
    fused_bf16 = prepare_fused_params(blocks, decoder_concats, jnp.bfloat16)
    fwd_bf16 = jax.jit(lambda a, s: kpconv_decoder_forward(fused_bf16, a, s))
    out_bf16 = jax.block_until_ready(fwd_bf16(x, skip_x))
    np.testing.assert_allclose(np.asarray(out_bf16), np.asarray(ref), rtol=1e-1, atol=1e-1)

    print("KERNEL_OK")
</pallas_src>

<mosaic_0001>
module attributes {stable_mosaic.version = 11 : i64} {
  func.func @_decoder_matmul_kernel(%arg0: i32, %arg1: memref<16x80xf32, #tpu.memory_space<vmem>>, %arg2: memref<80x128xf32, #tpu.memory_space<vmem>>, %arg3: memref<1x128xf32, #tpu.memory_space<vmem>>, %arg4: memref<16x128xf32, #tpu.memory_space<vmem>>) attributes {dimension_semantics = [#tpu.dimension_semantics<parallel>], iteration_bounds = array<i64: 1>, scalar_prefetch = 0 : i64, scratch_operands = 0 : i64, tpu.core_type = #tpu.core_type<tc>, window_params = [{transform_indices = @transform_0, window_bounds = array<i64: 16, 80>}, {pipeline_mode = #tpu.pipeline_mode<synchronous>, transform_indices = @transform_1, window_bounds = array<i64: 80, 128>}, {pipeline_mode = #tpu.pipeline_mode<synchronous>, transform_indices = @transform_2, window_bounds = array<i64: 1, 128>}, {transform_indices = @transform_3, window_bounds = array<i64: 16, 128>}]} {
    %c0 = arith.constant 0 : index
    %c0_0 = arith.constant 0 : index
    %0 = vector.load %arg1[%c0, %c0_0] : memref<16x80xf32, #tpu.memory_space<vmem>>, vector<16x80xf32>
    %c0_1 = arith.constant 0 : index
    %c0_2 = arith.constant 0 : index
    %1 = vector.load %arg2[%c0_1, %c0_2] : memref<80x128xf32, #tpu.memory_space<vmem>>, vector<80x128xf32>
    %cst = arith.constant dense<0.000000e+00> : vector<16x128xf32>
    %2 = tpu.matmul %0, %1, %cst {dimension_numbers = #tpu.dot_dimension_numbers<[1], [0], [0], [1], [0, 0, 1, 1], [], []>} : vector<16x80xf32>, vector<80x128xf32>, vector<16x128xf32> -> vector<16x128xf32>
    %c0_3 = arith.constant 0 : index
    %c0_4 = arith.constant 0 : index
    %3 = vector.load %arg3[%c0_3, %c0_4] : memref<1x128xf32, #tpu.memory_space<vmem>>, vector<1x128xf32>
    %4 = vector.broadcast %3 : vector<1x128xf32> to vector<16x128xf32>
    %5 = arith.addf %2, %4 : vector<16x128xf32>
    %c0_5 = arith.constant 0 : index
    %c0_6 = arith.constant 0 : index
    %6 = vector.load %arg4[%c0_5, %c0_6] : memref<16x128xf32, #tpu.memory_space<vmem>>, vector<16x128xf32>
    tpu.vector_store %arg4[%c0_5, %c0_6], %5 {strides = array<i32>} : memref<16x128xf32, #tpu.memory_space<vmem>>, vector<16x128xf32>,
    return
  }
  func.func @transform_0(%arg0: i32) -> (i32, i32) {
    %c0_i32 = arith.constant 0 : i32
    %c0_i32_0 = arith.constant 0 : i32
    return %arg0, %c0_i32 : i32, i32
  }
  func.func @transform_1(%arg0: i32) -> (i32, i32) {
    %c0_i32 = arith.constant 0 : i32
    %c0_i32_0 = arith.constant 0 : i32
    %c0_i32_1 = arith.constant 0 : i32
    return %c0_i32, %c0_i32_0 : i32, i32
  }
  func.func @transform_2(%arg0: i32) -> (i32, i32) {
    %c0_i32 = arith.constant 0 : i32
    %c0_i32_0 = arith.constant 0 : i32
    %c0_i32_1 = arith.constant 0 : i32
    return %c0_i32, %c0_i32_0 : i32, i32
  }
  func.func @transform_3(%arg0: i32) -> (i32, i32) {
    %c0_i32 = arith.constant 0 : i32
    %c0_i32_0 = arith.constant 0 : i32
    return %arg0, %c0_i32 : i32, i32
  }
}

</mosaic_0001>

<llo_original>
// kernel: _lambda_.1
$region0: #{_lambda_.1}
  #allocation0 [shape = 'u32[]', space=smem, size = 0x4, offset = 0x4, fixed_abs, tag = 'smem constant byte address 0x4 - core index']
  #allocation1 [shape = 'u32[72,128]{1,0:T(1,128)}', space=vmem, size = 0x9000, scoped, tag = 'internal scratch']
  %s0 = inlined_call_operand.vmem [shape: f32[16,80], index: 0, kind: input, shape index: {}]
  %s1 = inlined_call_operand.vmem [shape: f32[80,128], index: 1, kind: input, shape index: {}]
  %s2 = inlined_call_operand.vmem [shape: f32[1,128], index: 2, kind: input, shape index: {}]
  %s3 = inlined_call_operand.vmem [shape: f32[16,128], index: 3, kind: output, shape index: {}]
  %s4 = sld [smem:[#allocation0]]
  $region22: #{_lambda_.1} parent=0
    _
  %s6 = ssub.s32 1, %s4
  %s7 = scalar_select 0, %s6, %s4
  // Predicated region
  $region2: #{_lambda_.1} parent=0 // pred_check
    _
  $region3: #{_lambda_.1} parent=0 // pred_check_branch
    %9 = sbr.rel (0) target = $region5
  $region4: #{_lambda_.1} parent=0 // pred_region
    _
  $region5: #{_lambda_.1} parent=0 // pred_fallthru
    _
  // Predicated region
  $region6: #{_lambda_.1} parent=0 // pred_check
    _
  $region7: #{_lambda_.1} parent=0 // pred_check_branch
    %11 = sbr.rel (0) target = $region9
  $region8: #{_lambda_.1} parent=0 // pred_region
    _
  $region9: #{_lambda_.1} parent=0 // pred_fallthru
    _
  // Predicated region
  $region10: #{_lambda_.1} parent=0 // pred_check
    _
  $region11: #{_lambda_.1} parent=0 // pred_check_branch
    %13 = sbr.rel (0) target = $region13
  $region12: #{_lambda_.1} parent=0 // pred_region
    _
  $region13: #{_lambda_.1} parent=0 // pred_fallthru
    _
  %v14 = vld [vmem:[%s0] sm:$0xff]
  %v15 = vld [vmem:[%s0 + $0x8] sm:$0xff]
  %v16 = vld [vmem:[%s1] sm:$0xff]
  %v17 = vld [vmem:[%s1 + $0x8] sm:$0xff]
  %v18 = vld [vmem:[%s1 + $0x10] sm:$0xff]
  %v19 = vld [vmem:[%s1 + $0x18] sm:$0xff]
  %v20 = vld [vmem:[%s1 + $0x20] sm:$0xff]
  %v21 = vld [vmem:[%s1 + $0x28] sm:$0xff]
  %v22 = vld [vmem:[%s1 + $0x30] sm:$0xff]
  %v23 = vld [vmem:[%s1 + $0x38] sm:$0xff]
  %v24 = vld [vmem:[%s1 + $0x40] sm:$0xff]
  %v25 = vld [vmem:[%s1 + $0x48] sm:$0xff]
  %v26 = vld [vmem:[%s2] sm:$0x1]
  %v28 = vperm.slane %v26, 0
  %vm30 = vcmask 654336
  %v32 = vsel %vm30, %v14, 0
  %v35 = vsel %vm30, %v15, 0
  %37 = vmatpush.msra.mxu0 0.0
  %38 = vmatpush.msra.mxu0 0.0
  %39 = vmatpush.msra.mxu0 0.0
  %40 = vmatpush.msra.mxu0 0.0
  %41 = vmatpush.msra.mxu0 0.0
  %42 = vmatpush.msra.mxu0 0.0
  %43 = vmatpush.msra.mxu0 %v25
  %44 = vmatpush.msra.mxu0 %v24
  %45 = vmatpush.msra.mxu0 %v23
  %46 = vmatpush.msra.mxu0 %v22
  %47 = vmatpush.msra.mxu0 %v21
  %48 = vmatpush.msra.mxu0 %v20
  %49 = vmatpush.msra.mxu0 %v19
  %50 = vmatpush.msra.mxu0 %v18
  %51 = vmatpush.msra.mxu0 %v17
  %52 = vmatpush.msra.mxu0 %v16
  %53 = vmatmul.f32.gmra.mxu0 %v32
  %v54 = vpop.f32.mrf.mxu0
  %v55 = vadd.f32 %v28, %v54
  %56 = vmatmul.f32.gmra.mxu0 %v35
  %v57 = vpop.f32.mrf.mxu0
  %v58 = vadd.f32 %v28, %v57
  %59 = vdwg.mxu0
  %60 = vst [vmem:[%s3] sm:$0xff] %v55
  %61 = vst [vmem:[%s3 + $0x8] sm:$0xff] %v58
  // Predicated region
  $region14: #{_lambda_.1} parent=0 // pred_check
    _
  $region15: #{_lambda_.1} parent=0 // pred_check_branch
    %63 = sbr.rel (0) target = $region17
  $region16: #{_lambda_.1} parent=0 // pred_region
    _
  $region17: #{_lambda_.1} parent=0 // pred_fallthru
    _
  // Predicated region
  $region18: #{_lambda_.1} parent=0 // pred_check
    _
  $region19: #{_lambda_.1} parent=0 // pred_check_branch
    %65 = sbr.rel (0) target = $region21
  $region20: #{_lambda_.1} parent=0 // pred_region
    _
  $region21: #{_lambda_.1} parent=0 // pred_fallthru
    _

</llo_original>
